<compile_context>
chip_gen: v7x
topology: tpu7x:2x2x1
jax: 0.10.0
libtpu: 0.0.40
codegen_flags: <defaults>
</compile_context>

<pallas_src>
import functools

import jax
import jax.numpy as jnp
from jax.experimental import pallas as pl
from jax.experimental.pallas import tpu as pltpu

EPS = 1e-5
_VMEM_LIMIT = 32 * 1024 * 1024            # scoped VMEM cap, safe on v5e/v6e/v7x
_TILE_BYTES = 2 * 1024 * 1024             # per-x-block budget, two-pass fallback
_FUSED_PANEL_F32_BYTES = 3 * 1024 * 1024  # max resident full-N panel (as f32)


# ---------------------------------------------------------------------------
# Fused single-pass kernel: read x once, write y once.
# ---------------------------------------------------------------------------
def _lane_fold(v, k, d):
    """Fold per-lane partials of a (1, k*d) packed row into per-feature totals,
    broadcast back to every lane, using log2(k) XLU lane rotations."""
    step = d
    while step < k * d:                       # no-op when k == 1
        v = v + pltpu.roll(v, shift=step, axis=1)
        step *= 2
    return v


def _fused_kernel(x_ref, gamma_ref, beta_ref, o_ref, *, k, d, inv_n, eps):
    x = x_ref[...].astype(jnp.float32)                 # (n_rows, tile_d) resident
    s1 = _lane_fold(jnp.sum(x, axis=0, keepdims=True), k, d)
    mean = s1 * inv_n
    xc = x - mean                                      # true two-pass variance:
    s2 = _lane_fold(jnp.sum(xc * xc, axis=0, keepdims=True), k, d)  # no cancellation
    inv_std = jax.lax.rsqrt(s2 * inv_n + eps)          # EUP slot, essentially free
    scale = gamma_ref[...] * inv_std
    shift = beta_ref[...] - mean * scale
    o_ref[...] = (x * scale + shift).astype(o_ref.dtype)


# ---------------------------------------------------------------------------
# Two-pass fallback (only when a full-N column panel does not fit in VMEM).
# ---------------------------------------------------------------------------
def _stats_kernel(x_ref, sum_ref, sq_ref, *, tile_n, n_valid, need_mask):
    ni = pl.program_id(0)

    @pl.when(ni == 0)
    def _init():
        sum_ref[...] = jnp.zeros_like(sum_ref)
        sq_ref[...] = jnp.zeros_like(sq_ref)

    x = x_ref[...].astype(jnp.float32)

    if need_mask:
        last = pl.num_programs(0) - 1

        @pl.when(ni != last)                 # bulk tiles: no mask overhead
        def _bulk():
            sum_ref[...] += jnp.sum(x, axis=0, keepdims=True)
            sq_ref[...] += jnp.sum(x * x, axis=0, keepdims=True)

        @pl.when(ni == last)                 # only the last tile pays for the mask
        def _edge():
            row = ni * tile_n + jax.lax.broadcasted_iota(jnp.int32, x.shape, 0)
            xm = jnp.where(row < n_valid, x, 0.0)
            sum_ref[...] += jnp.sum(xm, axis=0, keepdims=True)
            sq_ref[...] += jnp.sum(xm * xm, axis=0, keepdims=True)
    else:
        sum_ref[...] += jnp.sum(x, axis=0, keepdims=True)
        sq_ref[...] += jnp.sum(x * x, axis=0, keepdims=True)


def _apply_kernel(x_ref, scale_ref, shift_ref, o_ref):
    y = x_ref[...].astype(jnp.float32) * scale_ref[...] + shift_ref[...]
    o_ref[...] = y.astype(o_ref.dtype)


# ---------------------------------------------------------------------------
# Wrapper
# ---------------------------------------------------------------------------
def _pack_k(n_total, d):
    """Largest power-of-two k with d*k <= 128, d | 128 and k | n_total."""
    if d >= 128 or 128 % d != 0:
        return 1
    k = 128 // d
    while k > 1 and n_total % k != 0:
        k //= 2
    return k


def norm1d_batchnorm(x, gamma, beta, *, eps=EPS, force_two_pass=False,
                     tile_bytes=_TILE_BYTES):
    """Norm1d forward (norm_type='batch_norm', training mode, affine=True)."""
    s = x.shape
    d = s[-1]
    x2 = x.reshape(-1, d)                         # (N, D)
    n_total = x2.shape[0]
    itemsize = jnp.dtype(x.dtype).itemsize

    # Lane-dense packing (pure reshape): fold k rows into the lane axis.
    k = _pack_k(n_total, d)
    n_rows = n_total // k
    d_cols = d * k
    x_ld = x2.reshape(n_rows, d_cols)

    gamma_ld = jnp.tile(gamma.astype(jnp.float32).reshape(1, d), (1, k))
    beta_ld = jnp.tile(beta.astype(jnp.float32).reshape(1, d), (1, k))
    inv_n = 1.0 / float(n_total)

    # ---- Fused single-pass path: full-N column panel resident in VMEM ----
    fused_tile_d = None
    if not force_two_pass:
        if (k == 1 or d_cols == 128) and n_rows * d_cols * 4 <= _FUSED_PANEL_F32_BYTES:
            fused_tile_d = d_cols
        elif (k == 1 and d_cols % 128 == 0
              and n_rows * 128 * 4 <= _FUSED_PANEL_F32_BYTES):
            cap = _FUSED_PANEL_F32_BYTES // (n_rows * 4)
            t = min(d_cols, (cap // 128) * 128)
            while t >= 128 and d_cols % t != 0:
                t -= 128
            if t >= 128:
                fused_tile_d = t

    if fused_tile_d is not None:
        nd = d_cols // fused_tile_d
        kern = functools.partial(_fused_kernel, k=k, d=d, inv_n=inv_n, eps=eps)
        out_ld = pl.pallas_call(
            kern,
            out_shape=jax.ShapeDtypeStruct((n_rows, d_cols), x.dtype),
            grid_spec=pltpu.PrefetchScalarGridSpec(
                num_scalar_prefetch=0,
                grid=(nd,),
                in_specs=[
                    pl.BlockSpec((n_rows, fused_tile_d), lambda di: (0, di)),
                    pl.BlockSpec((1, fused_tile_d), lambda di: (0, di)),
                    pl.BlockSpec((1, fused_tile_d), lambda di: (0, di)),
                ],
                out_specs=pl.BlockSpec((n_rows, fused_tile_d), lambda di: (0, di)),
            ),
            compiler_params=pltpu.CompilerParams(
                dimension_semantics=("parallel",),
                vmem_limit_bytes=_VMEM_LIMIT),
        )(x_ld, gamma_ld, beta_ld)
        return out_ld.reshape(s)

    # ---- Two-pass fallback: no D split, byte-sized contiguous row tiles ----
    row_align = 8 * max(1, 4 // max(1, itemsize))     # 8 f32 / 16 bf16 / 32 int8
    tile_n = (tile_bytes // max(1, d_cols * itemsize)) // row_align * row_align
    tile_n = max(row_align, tile_n)
    if tile_n >= n_rows:
        tile_n = n_rows
    nn = pl.cdiv(n_rows, tile_n)
    need_mask = (n_rows % tile_n) != 0

    stats_kernel = functools.partial(
        _stats_kernel, tile_n=tile_n, n_valid=n_rows, need_mask=need_mask)
    col_sum, col_sq = pl.pallas_call(
        stats_kernel,
        out_shape=(jax.ShapeDtypeStruct((1, d_cols), jnp.float32),
                   jax.ShapeDtypeStruct((1, d_cols), jnp.float32)),
        grid_spec=pltpu.PrefetchScalarGridSpec(
            num_scalar_prefetch=0,
            grid=(nn,),
            in_specs=[pl.BlockSpec((tile_n, d_cols), lambda ni: (ni, 0))],
            out_specs=(pl.BlockSpec((1, d_cols), lambda ni: (0, 0)),
                       pl.BlockSpec((1, d_cols), lambda ni: (0, 0))),
        ),
        compiler_params=pltpu.CompilerParams(
            dimension_semantics=("arbitrary",),
            vmem_limit_bytes=_VMEM_LIMIT),
    )(x_ld)

    # Tiny (D,)-sized math between the passes; negligible next to the large-N
    # HBM passes this path is reserved for (the fused path subsumes this).
    sum_d = col_sum.reshape(k, d).sum(axis=0)
    sq_d = col_sq.reshape(k, d).sum(axis=0)
    mean = sum_d * inv_n
    var = jnp.maximum(sq_d * inv_n - mean * mean, 0.0)   # biased (training BN)
    inv_std = jax.lax.rsqrt(var + eps)
    scale = gamma.astype(jnp.float32).reshape(d) * inv_std
    shift = beta.astype(jnp.float32).reshape(d) - mean * scale
    scale_ld = jnp.tile(scale, (k,)).reshape(1, d_cols)
    shift_ld = jnp.tile(shift, (k,)).reshape(1, d_cols)

    out_ld = pl.pallas_call(
        _apply_kernel,
        out_shape=jax.ShapeDtypeStruct((n_rows, d_cols), x.dtype),
        grid_spec=pltpu.PrefetchScalarGridSpec(
            num_scalar_prefetch=0,
            grid=(nn,),
            in_specs=[pl.BlockSpec((tile_n, d_cols), lambda ni: (ni, 0)),
                      pl.BlockSpec((1, d_cols), lambda ni: (0, 0)),
                      pl.BlockSpec((1, d_cols), lambda ni: (0, 0))],
            out_specs=pl.BlockSpec((tile_n, d_cols), lambda ni: (ni, 0)),
        ),
        compiler_params=pltpu.CompilerParams(
            dimension_semantics=("parallel",),
            vmem_limit_bytes=_VMEM_LIMIT),
    )(x_ld, scale_ld, shift_ld)

    return out_ld.reshape(s)


def _reference(x, gamma, beta, eps=EPS):
    s = x.shape
    d = s[-1]
    x2 = x.reshape(-1, d).astype(jnp.float32)
    mean = jnp.mean(x2, axis=0, keepdims=True)
    var = jnp.mean((x2 - mean) ** 2, axis=0, keepdims=True)   # biased, like BN
    y = (x2 - mean) / jnp.sqrt(var + eps)
    y = y * gamma.reshape(1, d) + beta.reshape(1, d)
    return y.reshape(s).astype(x.dtype)


if __name__ == "__main__":
    key = jax.random.PRNGKey(0)
    kx, kg, kb, kx2 = jax.random.split(key, 4)

    D = 16
    # nn.BatchNorm1d(D, affine=True) params: weight (D,), bias (D,).
    gamma = jnp.ones((D,), jnp.float32) + 0.1 * jax.random.normal(kg, (D,), jnp.float32)
    beta = 0.1 * jax.random.normal(kb, (D,), jnp.float32)

    # 1) Main path: fused single-pass kernel (x read once, y written once).
    x = jax.random.normal(kx, (2, 4, 16, D), dtype=jnp.float32)
    out = jax.block_until_ready(norm1d_batchnorm(x, gamma, beta))
    ref = _reference(x, gamma, beta)
    assert out.shape == x.shape
    assert jnp.allclose(out, ref, atol=1e-4, rtol=1e-5), "fused path mismatch"

    # 2) Exercise the large-N two-pass fallback (multi N tile, gated edge mask,
    #    partial last block, partial lane packing) on a small awkward shape.
    x_big = jax.random.normal(kx2, (5, 20, D), dtype=jnp.float32)   # N=100 rows
    out2 = jax.block_until_ready(
        norm1d_batchnorm(x_big, gamma, beta, force_two_pass=True, tile_bytes=6144))
    ref2 = _reference(x_big, gamma, beta)
    assert out2.shape == x_big.shape
    assert jnp.allclose(out2, ref2, atol=1e-4, rtol=1e-5), "two-pass path mismatch"

    print("KERNEL_OK")
</pallas_src>

<mosaic_0001>
module attributes {stable_mosaic.version = 11 : i64} {
  func.func @_fused_kernel(%arg0: i32, %arg1: memref<16x128xf32, #tpu.memory_space<vmem>>, %arg2: memref<1x128xf32, #tpu.memory_space<vmem>>, %arg3: memref<1x128xf32, #tpu.memory_space<vmem>>, %arg4: memref<16x128xf32, #tpu.memory_space<vmem>>) attributes {dimension_semantics = [#tpu.dimension_semantics<parallel>], iteration_bounds = array<i64: 1>, scalar_prefetch = 0 : i64, scratch_operands = 0 : i64, tpu.core_type = #tpu.core_type<tc>, window_params = [{transform_indices = @transform_0, window_bounds = array<i64: 16, 128>}, {transform_indices = @transform_1, window_bounds = array<i64: 1, 128>}, {transform_indices = @transform_2, window_bounds = array<i64: 1, 128>}, {transform_indices = @transform_3, window_bounds = array<i64: 16, 128>}]} {
    %c0 = arith.constant 0 : index
    %c0_0 = arith.constant 0 : index
    %0 = vector.load %arg1[%c0, %c0_0] : memref<16x128xf32, #tpu.memory_space<vmem>>, vector<16x128xf32>
    %cst = arith.constant dense<0.000000e+00> : vector<128xf32>
    %1 = vector.multi_reduction <add>, %0, %cst [0] : vector<16x128xf32> to vector<128xf32>
    %2 = vector.shape_cast %1 : vector<128xf32> to vector<1x128xf32>
    %c16_i32 = arith.constant 16 : i32
    %3 = tpu.dynamic_rotate %2 by %c16_i32 dim 1 : vector<1x128xf32>, i32 -> vector<1x128xf32>
    %4 = arith.addf %2, %3 : vector<1x128xf32>
    %c32_i32 = arith.constant 32 : i32
    %5 = tpu.dynamic_rotate %4 by %c32_i32 dim 1 : vector<1x128xf32>, i32 -> vector<1x128xf32>
    %6 = arith.addf %4, %5 : vector<1x128xf32>
    %c64_i32 = arith.constant 64 : i32
    %7 = tpu.dynamic_rotate %6 by %c64_i32 dim 1 : vector<1x128xf32>, i32 -> vector<1x128xf32>
    %8 = arith.addf %6, %7 : vector<1x128xf32>
    %cst_1 = arith.constant 7.812500e-03 : f32
    %9 = vector.broadcast %cst_1 : f32 to vector<1x128xf32>
    %10 = arith.mulf %8, %9 : vector<1x128xf32>
    %11 = vector.broadcast %10 : vector<1x128xf32> to vector<16x128xf32>
    %12 = arith.subf %0, %11 : vector<16x128xf32>
    %13 = arith.mulf %12, %12 : vector<16x128xf32>
    %cst_2 = arith.constant dense<0.000000e+00> : vector<128xf32>
    %14 = vector.multi_reduction <add>, %13, %cst_2 [0] : vector<16x128xf32> to vector<128xf32>
    %15 = vector.shape_cast %14 : vector<128xf32> to vector<1x128xf32>
    %c16_i32_3 = arith.constant 16 : i32
    %16 = tpu.dynamic_rotate %15 by %c16_i32_3 dim 1 : vector<1x128xf32>, i32 -> vector<1x128xf32>
    %17 = arith.addf %15, %16 : vector<1x128xf32>
    %c32_i32_4 = arith.constant 32 : i32
    %18 = tpu.dynamic_rotate %17 by %c32_i32_4 dim 1 : vector<1x128xf32>, i32 -> vector<1x128xf32>
    %19 = arith.addf %17, %18 : vector<1x128xf32>
    %c64_i32_5 = arith.constant 64 : i32
    %20 = tpu.dynamic_rotate %19 by %c64_i32_5 dim 1 : vector<1x128xf32>, i32 -> vector<1x128xf32>
    %21 = arith.addf %19, %20 : vector<1x128xf32>
    %cst_6 = arith.constant 7.812500e-03 : f32
    %22 = vector.broadcast %cst_6 : f32 to vector<1x128xf32>
    %23 = arith.mulf %21, %22 : vector<1x128xf32>
    %cst_7 = arith.constant 9.99999974E-6 : f32
    %24 = vector.broadcast %cst_7 : f32 to vector<1x128xf32>
    %25 = arith.addf %23, %24 : vector<1x128xf32>
    %26 = math.rsqrt %25 : vector<1x128xf32>
    %c0_8 = arith.constant 0 : index
    %c0_9 = arith.constant 0 : index
    %27 = vector.load %arg2[%c0_8, %c0_9] : memref<1x128xf32, #tpu.memory_space<vmem>>, vector<1x128xf32>
    %28 = arith.mulf %27, %26 : vector<1x128xf32>
    %c0_10 = arith.constant 0 : index
    %c0_11 = arith.constant 0 : index
    %29 = vector.load %arg3[%c0_10, %c0_11] : memref<1x128xf32, #tpu.memory_space<vmem>>, vector<1x128xf32>
    %30 = arith.mulf %10, %28 : vector<1x128xf32>
    %31 = arith.subf %29, %30 : vector<1x128xf32>
    %32 = vector.broadcast %28 : vector<1x128xf32> to vector<16x128xf32>
    %33 = arith.mulf %0, %32 : vector<16x128xf32>
    %34 = vector.broadcast %31 : vector<1x128xf32> to vector<16x128xf32>
    %35 = arith.addf %33, %34 : vector<16x128xf32>
    %c0_12 = arith.constant 0 : index
    %c0_13 = arith.constant 0 : index
    %36 = vector.load %arg4[%c0_12, %c0_13] : memref<16x128xf32, #tpu.memory_space<vmem>>, vector<16x128xf32>
    tpu.vector_store %arg4[%c0_12, %c0_13], %35 {strides = array<i32>} : memref<16x128xf32, #tpu.memory_space<vmem>>, vector<16x128xf32>,
    return
  }
  func.func @transform_0(%arg0: i32) -> (i32, i32) {
    %c0_i32 = arith.constant 0 : i32
    %c0_i32_0 = arith.constant 0 : i32
    return %c0_i32, %arg0 : i32, i32
  }
  func.func @transform_1(%arg0: i32) -> (i32, i32) {
    %c0_i32 = arith.constant 0 : i32
    %c0_i32_0 = arith.constant 0 : i32
    return %c0_i32, %arg0 : i32, i32
  }
  func.func @transform_2(%arg0: i32) -> (i32, i32) {
    %c0_i32 = arith.constant 0 : i32
    %c0_i32_0 = arith.constant 0 : i32
    return %c0_i32, %arg0 : i32, i32
  }
  func.func @transform_3(%arg0: i32) -> (i32, i32) {
    %c0_i32 = arith.constant 0 : i32
    %c0_i32_0 = arith.constant 0 : i32
    return %c0_i32, %arg0 : i32, i32
  }
}

</mosaic_0001>

<llo_original>
// kernel: tpu_custom_call.1
$region0: #{tpu_custom_call.1}
  #allocation0 [shape = 'u32[]', space=smem, size = 0x4, offset = 0x4, fixed_abs, tag = 'smem constant byte address 0x4 - core index']
  #allocation1 [shape = 'u32[144,128]{1,0:T(1,128)}', space=vmem, size = 0x12000, scoped, tag = 'internal scratch']
  %s0 = inlined_call_operand.hbm [shape: f32[16,128], index: 0, kind: input, shape index: {}]
  %s1 = inlined_call_operand.vmem [shape: f32[1,128], index: 1, kind: input, shape index: {}]
  %s2 = inlined_call_operand.vmem [shape: f32[1,128], index: 2, kind: input, shape index: {}]
  %s3 = inlined_call_operand.hbm [shape: f32[16,128], index: 3, kind: output, shape index: {}]
  %s4 = sld [smem:[#allocation0]]
  $region26: #{tpu_custom_call.1} parent=0
    _
  %s6 = ssub.s32 1, %s4
  %s7 = scalar_select 0, %s6, %s4
  $region1: #{tpu_custom_call.1} parent=0
    #allocation2 [shape = 'u8[8192]{0}', space=vmem, size = 0x2000, scoped, tag = 'input window, operand 0, single buffered']
    #allocation3 [shape = 's32[1]{0}', space=sflag, size = 0x4, scoped, tag = 'scoped memory for tpu_custom_call.1']
    #allocation4 [shape = 's32[1]{0}', space=sflag, size = 0x4, scoped, tag = 'scoped memory for tpu_custom_call.1']
    #allocation5 [shape = 'u8[8192]{0}', space=vmem, size = 0x2000, scoped, tag = 'output window, operand 0, single buffered']
    %8 = vsyncpa [#allocation3], 0
    %9 = vsyncpa [#allocation4], 0
    // Predicated region
    $region2: #{tpu_custom_call.1} parent=1 // pred_check
      _
    $region3: #{tpu_custom_call.1} parent=1 // pred_check_branch
      %11 = sbr.rel (0) target = $region5
    $region4: #{tpu_custom_call.1} parent=1 // pred_region
      %s13 = ssub.s32 256, 256
      %14 = vsyncadd [#allocation3], %s13
      %s15 = sshll.u32 [#allocation2], 4
      %s16 = int_to_ptr.vmem [resolvable:$true] %s15
      %21 = dma.hbm_to_vmem [thread:$0]  %s0, 256, %s16, [#allocation3], 128, 128, 8
    $region5: #{tpu_custom_call.1} parent=1 // pred_fallthru
      _
    // Predicated region
    $region6: #{tpu_custom_call.1} parent=1 // pred_check
      _
    $region7: #{tpu_custom_call.1} parent=1 // pred_check_branch
      %23 = sbr.rel (0) target = $region9
    $region8: #{tpu_custom_call.1} parent=1 // pred_region
      _
    $region9: #{tpu_custom_call.1} parent=1 // pred_fallthru
      _
    // Predicated region
    $region10: #{tpu_custom_call.1} parent=1 // pred_check
      _
    $region11: #{tpu_custom_call.1} parent=1 // pred_check_branch
      %25 = sbr.rel (0) target = $region13
    $region12: #{tpu_custom_call.1} parent=1 // pred_region
      _
    $region13: #{tpu_custom_call.1} parent=1 // pred_fallthru
      _
    // Predicated region
    $region14: #{tpu_custom_call.1} parent=1 // pred_check
      _
    $region15: #{tpu_custom_call.1} parent=1 // pred_check_branch
      %27 = sbr.rel (0) target = $region17
    $region16: #{tpu_custom_call.1} parent=1 // pred_region
      %28 = dma.done [#allocation3], 256
    $region17: #{tpu_custom_call.1} parent=1 // pred_fallthru
      _
    %v29 = vld [vmem:[#allocation2] sm:$0xff]
    %v30 = vld [vmem:[#allocation2 + $0x8] sm:$0xff]
    %v31 = vadd.f32 %v29, %v30
    %v32 = vrot.slane %v31, 4
    %v33 = vadd.f32 %v31, %v32
    %v34 = vrot.slane %v33, 2
    %v35 = vadd.f32 %v33, %v34
    %v36 = vrot.slane %v35, 1
    %v37 = vadd.f32 %v35, %v36
    %38 = vrot.lane.b32.xlu0 %v37, 16
    %v39 = vpop.permute.xlu0 %38
    %v40 = vadd.f32 %v37, %v39
    %41 = vrot.lane.b32.xlu0 %v40, 32
    %v42 = vpop.permute.xlu0 %41
    %v43 = vadd.f32 %v40, %v42
    %44 = vrot.lane.b32.xlu0 %v43, 64
    %v45 = vpop.permute.xlu0 %44
    %v46 = vadd.f32 %v43, %v45
    %v47 = vmul.f32 %v46, 0.0078125
    %v48 = vlaneseq
    %v49 = vshrl.u32 %v48, 7
    %v50 = vsub.s32 0, %v49
    %v51 = vrot.slane %v47, %v50
    %v52 = vsub.f32 %v29, %v51
    %v53 = vsub.f32 %v30, %v51
    %v54 = vmul.f32 %v52, %v52
    %v55 = vmul.f32 %v53, %v53
    %v56 = vadd.f32 %v54, %v55
    %v57 = vrot.slane %v56, 4
    %v58 = vadd.f32 %v56, %v57
    %v59 = vrot.slane %v58, 2
    %v60 = vadd.f32 %v58, %v59
    %v61 = vrot.slane %v60, 1
    %v62 = vadd.f32 %v60, %v61
    %63 = vrot.lane.b32.xlu0 %v62, 16
    %v64 = vpop.permute.xlu0 %63
    %v65 = vadd.f32 %v62, %v64
    %66 = vrot.lane.b32.xlu0 %v65, 32
    %v67 = vpop.permute.xlu0 %66
    %v68 = vadd.f32 %v65, %v67
    %69 = vrot.lane.b32.xlu0 %v68, 64
    %v70 = vpop.permute.xlu0 %69
    %v71 = vadd.f32 %v68, %v70
    %v72 = vmul.f32 %v71, 0.0078125
    %v73 = vadd.f32 %v72, 1e-05
    %v74 = vrsqrt.pop %v73
    %v75 = vld [vmem:[%s1] sm:$0x1]
    %v76 = vmul.f32 %v75, %v74
    %v77 = vld [vmem:[%s2] sm:$0x1]
    %v78 = vmul.f32 %v47, %v76
    %v79 = vsub.f32 %v77, %v78
    %v81 = vlaneseq
    %v82 = vshrl.u32 %v81, 7
    %v83 = vsub.s32 0, %v82
    %v84 = vrot.slane %v76, %v83
    %v86 = vmul.f32 %v29, %v84
    %v87 = vmul.f32 %v30, %v84
    %v89 = vlaneseq
    %v90 = vshrl.u32 %v89, 7
    %v91 = vsub.s32 0, %v90
    %v92 = vrot.slane %v79, %v91
    %v94 = vadd.f32 %v86, %v92
    %v95 = vadd.f32 %v87, %v92
    %96 = vst [vmem:[#allocation5] sm:$0xff] %v94
    %97 = vst [vmem:[#allocation5 + $0x8] sm:$0xff] %v95
    // Predicated region
    $region18: #{tpu_custom_call.1} parent=1 // pred_check
      _
    $region19: #{tpu_custom_call.1} parent=1 // pred_check_branch
      %99 = sbr.rel (0) target = $region21
    $region20: #{tpu_custom_call.1} parent=1 // pred_region
      %s101 = ssub.s32 256, 256
      %102 = vsyncadd [#allocation4], %s101
      %s103 = sshll.u32 [#allocation5], 4
      %s104 = int_to_ptr.vmem [resolvable:$true] %s103
      %109 = dma.vmem_to_hbm [thread:$0]  %s104, 256, %s3, [#allocation4], 128, 128, 8
    $region21: #{tpu_custom_call.1} parent=1 // pred_fallthru
      _
    // Predicated region
    $region22: #{tpu_custom_call.1} parent=1 // pred_check
      _
    $region23: #{tpu_custom_call.1} parent=1 // pred_check_branch
      %111 = sbr.rel (0) target = $region25
    $region24: #{tpu_custom_call.1} parent=1 // pred_region
      %112 = dma.done [#allocation4], 256
    $region25: #{tpu_custom_call.1} parent=1 // pred_fallthru
      _
    %113 = vsyncpa [#allocation3], 1
    %114 = vsyncpa [#allocation4], 1

</llo_original>
